<compile_context>
chip_gen: v7x
topology: tpu7x:2x2x1
jax: 0.10.0
libtpu: 0.0.40
codegen_flags: <defaults>
</compile_context>

<pallas_src>
import jax
import jax.numpy as jnp
from jax import lax
from jax.experimental import pallas as pl
from jax.experimental.pallas import tpu as pltpu


VMEM_TILE_BUDGET = 26 * 1024 * 1024   # tile footprint budget (double-buffered)
VMEM_LIMIT_BYTES = 48 * 1024 * 1024   # scoped VMEM limit (safe on v5e/v6e/v7x)

_M_TILES = (1024, 512, 256, 128)
_N_TILES = (1024, 512, 256, 128)
_K_TILES = (4096, 2048, 1024, 512, 256, 128)


def _round_up(x, m):
    return ((x + m - 1) // m) * m


def _candidates(dim, align, max_tile, tile_set):
    """(tile, padded_dim) candidates for one dimension."""
    if dim <= align:
        return [(dim, dim)]            # full-extent block, always legal
    cands = []
    if dim <= max_tile:
        cands.append((dim, dim))       # full-extent block, no padding
    for t in tile_set:
        if t > max_tile or t % align != 0:
            continue
        cands.append((t, _round_up(dim, t)))
    return cands


def _select_tiles(M, N, K, in_itemsize, out_itemsize, needs_acc, vmem_budget):
    """Pick (tm, tn, tk, Mp, Np, Kp) minimizing modeled HBM traffic."""
    m_opts = _candidates(M, 8, 1024, _M_TILES)
    n_opts = _candidates(N, 128, 1024, _N_TILES)
    k_opts = _candidates(K, 128, 4096, _K_TILES)
    best_key, best = None, None
    for tm, Mp in m_opts:
        for tn, Np in n_opts:
            for tk, Kp in k_opts:
                # double-buffered input tiles + double-buffered output tile
                # (+ f32 accumulator scratch when the output dtype is narrow)
                vmem = (2 * (tm * tk + tn * tk) * in_itemsize
                        + 2 * tm * tn * out_itemsize
                        + (tm * tn * 4 if needs_acc else 0))
                if vmem > vmem_budget:
                    continue
                gi, gj, gk = Mp // tm, Np // tn, Kp // tk
                # HBM traffic model (elements): A fetched gj times, B gi times.
                traffic = Mp * Kp * gj + Np * Kp * gi + Mp * Np
                key = (traffic, gi * gj * gk, -(tm * tn))
                if best_key is None or key < best_key:
                    best_key, best = key, (tm, tn, tk, Mp, Np, Kp)
    assert best is not None, "no tile configuration fits the VMEM budget"
    return best


def _dot_bt(a, b):
    # A(tm, tk) contracted with B(tn, tk) over the last dim of both -> (tm, tn)
    return lax.dot_general(
        a, b,
        dimension_numbers=(((1,), (1,)), ((), ())),
        preferred_element_type=jnp.float32,
    )


def _mm_kernel_direct(a_ref, b_ref, o_ref):
    # f32 output: accumulate straight into the resident output block.
    @pl.when(pl.program_id(2) == 0)
    def _():
        o_ref[...] = jnp.zeros_like(o_ref)

    o_ref[...] += _dot_bt(a_ref[...], b_ref[...])


def _mm_kernel_acc(a_ref, b_ref, o_ref, acc_ref):
    # Narrow output dtype: keep an f32 accumulator, cast once at the end.
    @pl.when(pl.program_id(2) == 0)
    def _():
        acc_ref[...] = jnp.zeros_like(acc_ref)

    acc_ref[...] += _dot_bt(a_ref[...], b_ref[...])

    @pl.when(pl.program_id(2) == pl.num_programs(2) - 1)
    def _():
        o_ref[...] = acc_ref[...].astype(o_ref.dtype)


def matmul_bt(a, b):
    """Compute A @ B.T with a tiled Pallas TPU matmul."""
    M, K = a.shape
    N, Kb = b.shape
    assert K == Kb, "inner dims must match"

    out_dtype = jnp.result_type(a.dtype, b.dtype)
    if a.dtype != b.dtype:
        a = a.astype(out_dtype)
        b = b.astype(out_dtype)

    direct = out_dtype == jnp.float32
    in_itemsize = jnp.dtype(a.dtype).itemsize
    out_itemsize = jnp.dtype(out_dtype).itemsize

    tm, tn, tk, Mp, Np, Kp = _select_tiles(
        M, N, K, in_itemsize, out_itemsize, not direct, VMEM_TILE_BUDGET)

    # Keep >= 2 blocks on the parallel axes when possible (v7x has 2 TCs).
    if (Mp // tm) * (Np // tn) == 1:
        if tm >= 256 and tm % 16 == 0 and Mp % (tm // 2) == 0:
            tm //= 2
        elif tn >= 256 and tn % 256 == 0 and Np % (tn // 2) == 0:
            tn //= 2

    # Zero-pad so every tile is full; padded K contributes nothing, padded
    # M/N rows/cols are sliced off below.
    a_p = a if (Mp == M and Kp == K) else jnp.pad(a, ((0, Mp - M), (0, Kp - K)))
    b_p = b if (Np == N and Kp == K) else jnp.pad(b, ((0, Np - N), (0, Kp - K)))

    gi, gj, gk = Mp // tm, Np // tn, Kp // tk

    cost = pl.CostEstimate(
        flops=2 * M * N * K,
        transcendentals=0,
        bytes_accessed=(Mp * Kp * gj + Np * Kp * gi) * in_itemsize
                       + Mp * Np * out_itemsize,
    )

    kernel = _mm_kernel_direct if direct else _mm_kernel_acc
    scratch = [] if direct else [pltpu.VMEM((tm, tn), jnp.float32)]

    out_p = pl.pallas_call(
        kernel,
        out_shape=jax.ShapeDtypeStruct((Mp, Np), out_dtype),
        grid_spec=pltpu.PrefetchScalarGridSpec(
            num_scalar_prefetch=0,
            grid=(gi, gj, gk),
            in_specs=[
                pl.BlockSpec((tm, tk), lambda i, j, k: (i, k)),  # A tile
                pl.BlockSpec((tn, tk), lambda i, j, k: (j, k)),  # B tile (row-major, contracted on last dim)
            ],
            out_specs=pl.BlockSpec((tm, tn), lambda i, j, k: (i, j)),
            scratch_shapes=scratch,
        ),
        compiler_params=pltpu.CompilerParams(
            dimension_semantics=("parallel", "parallel", "arbitrary"),
            vmem_limit_bytes=VMEM_LIMIT_BYTES,
        ),
        cost_estimate=cost,
    )(a_p, b_p)

    if Mp != M or Np != N:
        out_p = out_p[:M, :N]
    return out_p


matmul_bt = jax.jit(matmul_bt)


if __name__ == "__main__":
    key = jax.random.PRNGKey(0)
    ka, kb = jax.random.split(key)
    M, K, N = 256, 128, 256
    A = jax.random.normal(ka, (M, K), dtype=jnp.float32)
    B = jax.random.normal(kb, (N, K), dtype=jnp.float32)

    out = matmul_bt(A, B)
    jax.block_until_ready(out)

    ref = A @ B.T
    assert out.shape == (M, N)
    assert jnp.allclose(out, ref, atol=1e-3, rtol=1e-3), "mismatch vs reference"
    print("KERNEL_OK")
</pallas_src>

<mosaic_0001>
module attributes {stable_mosaic.version = 11 : i64} {
  func.func @_mm_kernel_direct(%arg0: i32, %arg1: i32, %arg2: i32, %arg3: memref<128x128xf32, #tpu.memory_space<vmem>>, %arg4: memref<256x128xf32, #tpu.memory_space<vmem>>, %arg5: memref<128x256xf32, #tpu.memory_space<vmem>>) attributes {dimension_semantics = [#tpu.dimension_semantics<parallel>, #tpu.dimension_semantics<parallel>, #tpu.dimension_semantics<arbitrary>], iteration_bounds = array<i64: 2, 1, 1>, scalar_prefetch = 0 : i64, scratch_operands = 0 : i64, tpu.core_type = #tpu.core_type<tc>, window_params = [{transform_indices = @transform_0, window_bounds = array<i64: 128, 128>}, {transform_indices = @transform_1, window_bounds = array<i64: 256, 128>}, {transform_indices = @transform_2, window_bounds = array<i64: 128, 256>}]} {
    %c0_i32 = arith.constant 0 : i32
    %0 = arith.cmpi eq, %arg2, %c0_i32 : i32
    %1 = arith.extui %0 : i1 to i32
    %c0_i32_0 = arith.constant 0 : i32
    %2 = arith.cmpi ne, %1, %c0_i32_0 : i32
    scf.if %2 {
      %cst_8 = arith.constant 0.000000e+00 : f32
      %9 = vector.broadcast %cst_8 : f32 to vector<128x256xf32>
      %c0_9 = arith.constant 0 : index
      %c0_10 = arith.constant 0 : index
      %10 = vector.load %arg5[%c0_9, %c0_10] : memref<128x256xf32, #tpu.memory_space<vmem>>, vector<128x256xf32>
      tpu.vector_store %arg5[%c0_9, %c0_10], %9 {strides = array<i32>} : memref<128x256xf32, #tpu.memory_space<vmem>>, vector<128x256xf32>,
    } else {
    }
    %c0 = arith.constant 0 : index
    %c0_1 = arith.constant 0 : index
    %3 = vector.load %arg5[%c0, %c0_1] : memref<128x256xf32, #tpu.memory_space<vmem>>, vector<128x256xf32>
    %c0_2 = arith.constant 0 : index
    %c0_3 = arith.constant 0 : index
    %4 = vector.load %arg3[%c0_2, %c0_3] : memref<128x128xf32, #tpu.memory_space<vmem>>, vector<128x128xf32>
    %c0_4 = arith.constant 0 : index
    %c0_5 = arith.constant 0 : index
    %5 = vector.load %arg4[%c0_4, %c0_5] : memref<256x128xf32, #tpu.memory_space<vmem>>, vector<256x128xf32>
    %cst = arith.constant dense<0.000000e+00> : vector<128x256xf32>
    %6 = tpu.matmul %4, %5, %cst {dimension_numbers = #tpu.dot_dimension_numbers<[1], [1], [0], [0], [0, 0, 1, 0], [], []>} : vector<128x128xf32>, vector<256x128xf32>, vector<128x256xf32> -> vector<128x256xf32>
    %7 = arith.addf %3, %6 : vector<128x256xf32>
    %c0_6 = arith.constant 0 : index
    %c0_7 = arith.constant 0 : index
    %8 = vector.load %arg5[%c0_6, %c0_7] : memref<128x256xf32, #tpu.memory_space<vmem>>, vector<128x256xf32>
    tpu.vector_store %arg5[%c0_6, %c0_7], %7 {strides = array<i32>} : memref<128x256xf32, #tpu.memory_space<vmem>>, vector<128x256xf32>,
    return
  }
  func.func @transform_0(%arg0: i32, %arg1: i32, %arg2: i32) -> (i32, i32) {
    %c0_i32 = arith.constant 0 : i32
    return %arg0, %arg2 : i32, i32
  }
  func.func @transform_1(%arg0: i32, %arg1: i32, %arg2: i32) -> (i32, i32) {
    %c0_i32 = arith.constant 0 : i32
    return %arg1, %arg2 : i32, i32
  }
  func.func @transform_2(%arg0: i32, %arg1: i32, %arg2: i32) -> (i32, i32) {
    %c0_i32 = arith.constant 0 : i32
    return %arg0, %arg1 : i32, i32
  }
}

</mosaic_0001>

<llo_original>
// kernel: matmul_bt.1
$region0: #{matmul_bt.1}
  #allocation0 [shape = 'u32[]', space=smem, size = 0x4, offset = 0x4, fixed_abs, tag = 'smem constant byte address 0x4 - core index']
  #allocation1 [shape = 'u32[144,128]{1,0:T(1,128)}', space=vmem, size = 0x12000, scoped, tag = 'internal scratch']
  %s0 = inlined_call_operand.hbm [shape: f32[256,128], index: 0, kind: input, shape index: {}]
  %s1 = inlined_call_operand.hbm [shape: f32[256,128], index: 1, kind: input, shape index: {}]
  %s2 = inlined_call_operand.hbm [shape: f32[256,256], index: 2, kind: output, shape index: {}]
  %s3 = sld [smem:[#allocation0]]
  $region53: #{matmul_bt.1} parent=0
    _
  %s5 = ssub.s32 1, %s3
  %s6 = scalar_select 0, %s5, %s3
  $region1: #{matmul_bt.1} parent=0
    #allocation2 [shape = 'u8[131072]{0}', space=vmem, size = 0x20000, scoped, tag = 'input window, operand 0']
    #allocation3 [shape = 's32[2]{0}', space=sflag, size = 0x8, scoped, tag = 'scoped memory for matmul_bt.1']
    #allocation4 [shape = 's32[2]{0}', space=sflag, size = 0x8, scoped, tag = 'scoped memory for matmul_bt.1']
    #allocation5 [shape = 'u8[131072]{0}', space=vmem, size = 0x20000, scoped, tag = 'input window, operand 1, single buffered']
    #allocation6 [shape = 's32[1]{0}', space=sflag, size = 0x4, scoped, tag = 'scoped memory for matmul_bt.1']
    #allocation7 [shape = 'u8[262144]{0}', space=vmem, size = 0x40000, scoped, tag = 'output window, operand 0']
    %7 = vsyncpa [#allocation3], 0
    %s8 = scalar_lea.sflag [#allocation3], 1
    %9 = vsyncpa %s8, 0
    %10 = vsyncpa [#allocation6], 0
    %11 = vsyncpa [#allocation4], 0
    %s12 = scalar_lea.sflag [#allocation4], 1
    %13 = vsyncpa %s12, 0
    loop: start=0, step=1, limit=4
    $region2: #{matmul_bt.1} parent=1 // loop_pre_header
      _
    $region3: #{matmul_bt.1} parent=1 // loop_header
      %s15 = sphi 0, %s19
      %p16 = scmp.ge.s32.totalorder %s15, 4
      %s22 = sphi 0, %s41
      %s23 = sphi 0, %s37
      %s24 = sphi 0, %s33
      %s25 = sphi 0, %s22
      %s26 = sphi 0, %s23
      %s27 = sphi 0, %s24
      %s28 = sphi 0, %s25
      %s29 = sphi 0, %s26
      %s30 = sphi 0, %s27
      %s46 = sphi 0, %s48
      %s49 = sphi 0, %s46
      %s50 = sphi 0, %s49
      %s66 = sphi 0, %s50
      %s74 = sphi 0, %s76
      %s77 = sphi 0, %s74
      %s78 = sphi 0, %s77
      %s94 = sphi 0, %s78
      %s102 = sphi 0, %s104
      %s105 = sphi 0, %s102
      %s106 = sphi 0, %s105
      %s122 = sphi 0, %s106
    $region4: #{matmul_bt.1} parent=1 // loop_header_branch
      %18 = sbr.rel (%p16) target = $region8
    $region5: #{matmul_bt.1} parent=1 // loop_body
      %s20 = ssub.s32 %s15, 1
      %s21 = ssub.s32 %s15, 2
      %s31 = sadd.s32 1, %s24
      %p32 = scmp.ge.s32.totalorder %s31, 1
      %s33 = scalar_select %p32, 0, %s31
      %s34 = sadd.s32 1, %s23
      %s35 = scalar_select %p32, %s34, %s23
      %p36 = scmp.ge.s32.totalorder %s35, 1
      %s37 = scalar_select %p36, 0, %s35
      %s38 = sadd.s32 1, %s22
      %s39 = scalar_select %p36, %s38, %s22
      %p40 = scmp.ge.s32.totalorder %s39, 2
      %s41 = scalar_select %p40, 0, %s39
      %s42 = ssub.s32 %s22, %s41
      %s43 = ssub.s32 %s24, %s33
      %s44 = sor.u32 %s42, %s43
      %p45 = scmp.eq.s32.totalorder %s44, 0
      %s47 = sadd.s32 %s46, 1
      %s48 = scalar_select %p45, %s46, %s47
      %p51 = pneg %p45
      %p52 = scmp.eq.s32.totalorder %s15, 1
      %p53 = por %p51, %p52
      %p54 = scmp.ne.s32.totalorder %s46, %s49
      %p55 = scmp.eq.s32.totalorder %s15, 0
      %p56 = por %p54, %p55
      %p57 = scmp.ne.s32.totalorder %s46, %s49
      %p58 = scmp.eq.s32.totalorder %s20, 1
      %p59 = por %p57, %p58
      %p60 = scmp.ne.s32.totalorder %s49, %s50
      %p61 = scmp.eq.s32.totalorder %s20, 0
      %p62 = por %p60, %p61
      %p63 = scmp.ne.s32.totalorder %s49, %s50
      %p64 = scmp.eq.s32.totalorder %s21, 1
      %p65 = por %p63, %p64
      %p67 = scmp.ne.s32.totalorder %s50, %s66
      %p68 = scmp.eq.s32.totalorder %s21, 0
      %p69 = por %p67, %p68
      %s70 = ssub.s32 %s23, %s37
      %s71 = ssub.s32 %s24, %s33
      %s72 = sor.u32 %s70, %s71
      %p73 = scmp.eq.s32.totalorder %s72, 0
      %s75 = sadd.s32 %s74, 1
      %s76 = scalar_select %p73, %s74, %s75
      %p79 = pneg %p73
      %p80 = scmp.eq.s32.totalorder %s15, 1
      %p81 = por %p79, %p80
      %p82 = scmp.ne.s32.totalorder %s74, %s77
      %p83 = scmp.eq.s32.totalorder %s15, 0
      %p84 = por %p82, %p83
      %p85 = scmp.ne.s32.totalorder %s74, %s77
      %p86 = scmp.eq.s32.totalorder %s20, 1
      %p87 = por %p85, %p86
      %p88 = scmp.ne.s32.totalorder %s77, %s78
      %p89 = scmp.eq.s32.totalorder %s20, 0
      %p90 = por %p88, %p89
      %p91 = scmp.ne.s32.totalorder %s77, %s78
      %p92 = scmp.eq.s32.totalorder %s21, 1
      %p93 = por %p91, %p92
      %p95 = scmp.ne.s32.totalorder %s78, %s94
      %p96 = scmp.eq.s32.totalorder %s21, 0
      %p97 = por %p95, %p96
      %s98 = ssub.s32 %s22, %s41
      %s99 = ssub.s32 %s23, %s37
      %s100 = sor.u32 %s98, %s99
      %p101 = scmp.eq.s32.totalorder %s100, 0
      %s103 = sadd.s32 %s102, 1
      %s104 = scalar_select %p101, %s102, %s103
      %p107 = pneg %p101
      %p108 = scmp.eq.s32.totalorder %s15, 1
      %p109 = por %p107, %p108
      %p110 = scmp.ne.s32.totalorder %s102, %s105
      %p111 = scmp.eq.s32.totalorder %s15, 0
      %p112 = por %p110, %p111
      %p113 = scmp.ne.s32.totalorder %s102, %s105
      %p114 = scmp.eq.s32.totalorder %s20, 1
      %p115 = por %p113, %p114
      %p116 = scmp.ne.s32.totalorder %s105, %s106
      %p117 = scmp.eq.s32.totalorder %s20, 0
      %p118 = por %p116, %p117
      %p119 = scmp.ne.s32.totalorder %s105, %s106
      %p120 = scmp.eq.s32.totalorder %s21, 1
      %p121 = por %p119, %p120
      %p123 = scmp.ne.s32.totalorder %s106, %s122
      %p124 = scmp.eq.s32.totalorder %s21, 0
      %p125 = por %p123, %p124
      %p126 = scmp.le.s32.totalorder 1, %s15
      %p127 = scmp.lt.s32.totalorder %s15, 3
      %p128 = pnand %p126, %p127
      %p129 = pneg %p128
      // Predicated region
      $region9: #{matmul_bt.1} parent=5 // pred_check
        _
      $region10: #{matmul_bt.1} parent=5 // pred_check_branch
        %131 = sbr.rel (%p128) target = $region12
      $region11: #{matmul_bt.1} parent=5 // pred_region
        %s132 = ssub.s32 %s15, 1
        // Predicated region
        $region13: #{matmul_bt.1} parent=11 // pred_check
          %p133 = pneg %p90
        $region14: #{matmul_bt.1} parent=11 // pred_check_branch
          %135 = sbr.rel (%p133) target = $region16
        $region15: #{matmul_bt.1} parent=11 // pred_region
          %s136 = smul.u32 32, %s26
          %s138 = ssub.s32 4096, 4096
          %139 = vsyncadd [#allocation6], %s138
          %s140 = sadd.s32 %s27, %s136
          %s141 = smul.addr %s140, 128
          %s142 = scalar_lea.hbm %s1, %s141
          %s143 = sshll.u32 [#allocation5], 4
          %s144 = int_to_ptr.vmem [resolvable:$true] %s143
          %149 = dma.hbm_to_vmem [thread:$0]  %s142, 4096, %s144, [#allocation6], 128, 128, 8
        $region16: #{matmul_bt.1} parent=11 // pred_fallthru
          _
      $region12: #{matmul_bt.1} parent=5 // pred_fallthru
        _
      %p150 = scmp.lt.s32.totalorder %s15, 2
      // Predicated region
      $region17: #{matmul_bt.1} parent=5 // pred_check
        %p151 = pneg %p150
      $region18: #{matmul_bt.1} parent=5 // pred_check_branch
        %153 = sbr.rel (%p151) target = $region20
      $region19: #{matmul_bt.1} parent=5 // pred_region
        // Predicated region
        $region21: #{matmul_bt.1} parent=19 // pred_check
          %p154 = pneg %p56
        $region22: #{matmul_bt.1} parent=19 // pred_check_branch
          %156 = sbr.rel (%p154) target = $region24
        $region23: #{matmul_bt.1} parent=19 // pred_region
          %s157 = sand.u32 %s46, 1
          %s158 = scalar_lea.sflag [#allocation3], %s157
          %s159 = sand.u32 %s46, 1
          %s160 = smul.addr %s159, 128
          %s161 = scalar_lea.vmem [#allocation2], %s160
          %s162 = smul.u32 16, %s22
          %s164 = ssub.s32 2048, 2048
          %165 = vsyncadd %s158, %s164
          %s166 = sadd.s32 %s24, %s162
          %s167 = smul.addr %s166, 128
          %s168 = scalar_lea.hbm %s0, %s167
          %s169 = sshll.u32 %s161, 4
          %s170 = int_to_ptr.vmem [resolvable:$true] %s169
          %175 = dma.hbm_to_vmem [thread:$0]  %s168, 2048, %s170, %s158, 128, 128, 8
        $region24: #{matmul_bt.1} parent=19 // pred_fallthru
          _
      $region20: #{matmul_bt.1} parent=5 // pred_fallthru
        _
      %p176 = scmp.le.s32.totalorder 1, %s15
      %p177 = scmp.lt.s32.totalorder %s15, 3
      %p178 = pnand %p176, %p177
      %p179 = pneg %p178
      // Predicated region
      $region25: #{matmul_bt.1} parent=5 // pred_check
        _
      $region26: #{matmul_bt.1} parent=5 // pred_check_branch
        %181 = sbr.rel (%p178) target = $region28
      $region27: #{matmul_bt.1} parent=5 // pred_region
        %s182 = ssub.s32 %s15, 1
        %s183 = sand.u32 %s49, 1
        %s184 = scalar_lea.sflag [#allocation3], %s183
        %s185 = sand.u32 %s49, 1
        %s186 = smul.addr %s185, 128
        %s187 = scalar_lea.vmem [#allocation2], %s186
        // Predicated region
        $region29: #{matmul_bt.1} parent=27 // pred_check
          %p188 = pneg %p62
        $region30: #{matmul_bt.1} parent=27 // pred_check_branch
          %190 = sbr.rel (%p188) target = $region32
        $region31: #{matmul_bt.1} parent=27 // pred_region
          %191 = dma.done %s184, 2048
        $region32: #{matmul_bt.1} parent=27 // pred_fallthru
          _
        // Predicated region
        $region33: #{matmul_bt.1} parent=27 // pred_check
          %p192 = pneg %p90
        $region34: #{matmul_bt.1} parent=27 // pred_check_branch
          %194 = sbr.rel (%p192) target = $region36
        $region35: #{matmul_bt.1} parent=27 // pred_region
          %195 = dma.done [#allocation6], 4096
        $region36: #{matmul_bt.1} parent=27 // pred_fallthru
          _
        %s196 = sand.u32 %s49, 1
        %s197 = scalar_lea.sflag [#allocation3], %s196
        %s198 = sand.u32 %s49, 1
        %s199 = smul.addr %s198, 128
        %s200 = scalar_lea.vmem [#allocation2], %s199
        %p201 = pneg %p62
        %p202 = pneg %p59
        %p203 = pneg %p90
        %p204 = pneg %p87
        %p205 = pneg %p118
        %p206 = pneg %p115
        %s207 = sand.u32 %s105, 1
        %s208 = scalar_lea.sflag [#allocation4], %s207
        %s209 = sand.u32 %s105, 1
        %s210 = smul.addr %s209, 256
        %s211 = scalar_lea.vmem [#allocation7], %s210
        %s212 = smul.u32 16, %s25
        %s213 = smul.u32 32, %s26
        %s214 = smul.u32 16, %s25
        %s215 = smul.u32 2, %s26
        %p216 = scmp.eq.s32.totalorder %s27, 0
        // Predicated region
        $region37: #{matmul_bt.1} parent=27 // pred_check
          %p217 = pneg %p216
        $region38: #{matmul_bt.1} parent=27 // pred_check_branch
          %219 = sbr.rel (%p217) target = $region40
        $region39: #{matmul_bt.1} parent=27 // pred_region
          %220 = vst [vmem:[%s211] sm:$0xff] 0.0
          %221 = vst [vmem:[%s211 + $0x8] sm:$0xff] 0.0
          %222 = vst [vmem:[%s211 + $0x10] sm:$0xff] 0.0
          %223 = vst [vmem:[%s211 + $0x18] sm:$0xff] 0.0
          %224 = vst [vmem:[%s211 + $0x20] sm:$0xff] 0.0
          %225 = vst [vmem:[%s211 + $0x28] sm:$0xff] 0.0
          %226 = vst [vmem:[%s211 + $0x30] sm:$0xff] 0.0
          %227 = vst [vmem:[%s211 + $0x38] sm:$0xff] 0.0
          %228 = vst [vmem:[%s211 + $0x40] sm:$0xff] 0.0
          %229 = vst [vmem:[%s211 + $0x48] sm:$0xff] 0.0
          %230 = vst [vmem:[%s211 + $0x50] sm:$0xff] 0.0
          %231 = vst [vmem:[%s211 + $0x58] sm:$0xff] 0.0
          %232 = vst [vmem:[%s211 + $0x60] sm:$0xff] 0.0
          %233 = vst [vmem:[%s211 + $0x68] sm:$0xff] 0.0
          %234 = vst [vmem:[%s211 + $0x70] sm:$0xff] 0.0
          %235 = vst [vmem:[%s211 + $0x78] sm:$0xff] 0.0
          %236 = vst [vmem:[%s211 + $0x80] sm:$0xff] 0.0
          %237 = vst [vmem:[%s211 + $0x88] sm:$0xff] 0.0
          %238 = vst [vmem:[%s211 + $0x90] sm:$0xff] 0.0
          %239 = vst [vmem:[%s211 + $0x98] sm:$0xff] 0.0
          %240 = vst [vmem:[%s211 + $0xa0] sm:$0xff] 0.0
          %241 = vst [vmem:[%s211 + $0xa8] sm:$0xff] 0.0
          %242 = vst [vmem:[%s211 + $0xb0] sm:$0xff] 0.0
          %243 = vst [vmem:[%s211 + $0xb8] sm:$0xff] 0.0
          %244 = vst [vmem:[%s211 + $0xc0] sm:$0xff] 0.0
          %245 = vst [vmem:[%s211 + $0xc8] sm:$0xff] 0.0
          %246 = vst [vmem:[%s211 + $0xd0] sm:$0xff] 0.0
          %247 = vst [vmem:[%s211 + $0xd8] sm:$0xff] 0.0
          %248 = vst [vmem:[%s211 + $0xe0] sm:$0xff] 0.0
          %249 = vst [vmem:[%s211 + $0xe8] sm:$0xff] 0.0
          %250 = vst [vmem:[%s211 + $0xf0] sm:$0xff] 0.0
          %251 = vst [vmem:[%s211 + $0xf8] sm:$0xff] 0.0
        $region40: #{matmul_bt.1} parent=27 // pred_fallthru
          _
        %v252 = vld [vmem:[%s211] sm:$0xff]
        %v253 = vld [vmem:[%s211 + $0x8] sm:$0xff]
        %v254 = vld [vmem:[%s211 + $0x10] sm:$0xff]
        %v255 = vld [vmem:[%s211 + $0x18] sm:$0xff]
        %v256 = vld [vmem:[%s211 + $0x20] sm:$0xff]
        %v257 = vld [vmem:[%s211 + $0x28] sm:$0xff]
        %v258 = vld [vmem:[%s211 + $0x30] sm:$0xff]
        %v259 = vld [vmem:[%s211 + $0x38] sm:$0xff]
        %v260 = vld [vmem:[%s211 + $0x40] sm:$0xff]
        %v261 = vld [vmem:[%s211 + $0x48] sm:$0xff]
        %v262 = vld [vmem:[%s211 + $0x50] sm:$0xff]
        %v263 = vld [vmem:[%s211 + $0x58] sm:$0xff]
        %v264 = vld [vmem:[%s211 + $0x60] sm:$0xff]
        %v265 = vld [vmem:[%s211 + $0x68] sm:$0xff]
        %v266 = vld [vmem:[%s211 + $0x70] sm:$0xff]
        %v267 = vld [vmem:[%s211 + $0x78] sm:$0xff]
        %v268 = vld [vmem:[%s211 + $0x80] sm:$0xff]
        %v269 = vld [vmem:[%s211 + $0x88] sm:$0xff]
        %v270 = vld [vmem:[%s211 + $0x90] sm:$0xff]
        %v271 = vld [vmem:[%s211 + $0x98] sm:$0xff]
        %v272 = vld [vmem:[%s211 + $0xa0] sm:$0xff]
        %v273 = vld [vmem:[%s211 + $0xa8] sm:$0xff]
        %v274 = vld [vmem:[%s211 + $0xb0] sm:$0xff]
        %v275 = vld [vmem:[%s211 + $0xb8] sm:$0xff]
        %v276 = vld [vmem:[%s211 + $0xc0] sm:$0xff]
        %v277 = vld [vmem:[%s211 + $0xc8] sm:$0xff]
        %v278 = vld [vmem:[%s211 + $0xd0] sm:$0xff]
        %v279 = vld [vmem:[%s211 + $0xd8] sm:$0xff]
        %v280 = vld [vmem:[%s211 + $0xe0] sm:$0xff]
        %v281 = vld [vmem:[%s211 + $0xe8] sm:$0xff]
        %v282 = vld [vmem:[%s211 + $0xf0] sm:$0xff]
        %v283 = vld [vmem:[%s211 + $0xf8] sm:$0xff]
        %v284 = vld [vmem:[%s187] sm:$0xff]
        %v285 = vld [vmem:[%s187 + $0x8] sm:$0xff]
        %v286 = vld [vmem:[%s187 + $0x10] sm:$0xff]
        %v287 = vld [vmem:[%s187 + $0x18] sm:$0xff]
        %v288 = vld [vmem:[%s187 + $0x20] sm:$0xff]
        %v289 = vld [vmem:[%s187 + $0x28] sm:$0xff]
        %v290 = vld [vmem:[%s187 + $0x30] sm:$0xff]
        %v291 = vld [vmem:[%s187 + $0x38] sm:$0xff]
        %v292 = vld [vmem:[%s187 + $0x40] sm:$0xff]
        %v293 = vld [vmem:[%s187 + $0x48] sm:$0xff]
        %v294 = vld [vmem:[%s187 + $0x50] sm:$0xff]
        %v295 = vld [vmem:[%s187 + $0x58] sm:$0xff]
        %v296 = vld [vmem:[%s187 + $0x60] sm:$0xff]
        %v297 = vld [vmem:[%s187 + $0x68] sm:$0xff]
        %v298 = vld [vmem:[%s187 + $0x70] sm:$0xff]
        %v299 = vld [vmem:[%s187 + $0x78] sm:$0xff]
        %v300 = vld [vmem:[#allocation5] sm:$0xff]
        %v301 = vld [vmem:[#allocation5 + $0x8] sm:$0xff]
        %v302 = vld [vmem:[#allocation5 + $0x10] sm:$0xff]
        %v303 = vld [vmem:[#allocation5 + $0x18] sm:$0xff]
        %v304 = vld [vmem:[#allocation5 + $0x20] sm:$0xff]
        %v305 = vld [vmem:[#allocation5 + $0x28] sm:$0xff]
        %v306 = vld [vmem:[#allocation5 + $0x30] sm:$0xff]
        %v307 = vld [vmem:[#allocation5 + $0x38] sm:$0xff]
        %v308 = vld [vmem:[#allocation5 + $0x40] sm:$0xff]
        %v309 = vld [vmem:[#allocation5 + $0x48] sm:$0xff]
        %v310 = vld [vmem:[#allocation5 + $0x50] sm:$0xff]
        %v311 = vld [vmem:[#allocation5 + $0x58] sm:$0xff]
        %v312 = vld [vmem:[#allocation5 + $0x60] sm:$0xff]
        %v313 = vld [vmem:[#allocation5 + $0x68] sm:$0xff]
        %v314 = vld [vmem:[#allocation5 + $0x70] sm:$0xff]
        %v315 = vld [vmem:[#allocation5 + $0x78] sm:$0xff]
        %v316 = vld [vmem:[#allocation5 + $0x80] sm:$0xff]
        %v317 = vld [vmem:[#allocation5 + $0x88] sm:$0xff]
        %v318 = vld [vmem:[#allocation5 + $0x90] sm:$0xff]
        %v319 = vld [vmem:[#allocation5 + $0x98] sm:$0xff]
        %v320 = vld [vmem:[#allocation5 + $0xa0] sm:$0xff]
        %v321 = vld [vmem:[#allocation5 + $0xa8] sm:$0xff]
        %v322 = vld [vmem:[#allocation5 + $0xb0] sm:$0xff]
        %v323 = vld [vmem:[#allocation5 + $0xb8] sm:$0xff]
        %v324 = vld [vmem:[#allocation5 + $0xc0] sm:$0xff]
        %v325 = vld [vmem:[#allocation5 + $0xc8] sm:$0xff]
        %v326 = vld [vmem:[#allocation5 + $0xd0] sm:$0xff]
        %v327 = vld [vmem:[#allocation5 + $0xd8] sm:$0xff]
        %v328 = vld [vmem:[#allocation5 + $0xe0] sm:$0xff]
        %v329 = vld [vmem:[#allocation5 + $0xe8] sm:$0xff]
        %v330 = vld [vmem:[#allocation5 + $0xf0] sm:$0xff]
        %v331 = vld [vmem:[#allocation5 + $0xf8] sm:$0xff]
        %332 = vmatprep.subr.mxu0 0.0
        %333 = vmatpush1.xpose.msra.mxu0 %v300
        %334 = vmatprep.subr.mxu0 0.0
        %335 = vmatpush1.xpose.msra.mxu0 %v301
        %336 = vmatprep.subr.mxu0 0.0
        %337 = vmatpush1.xpose.msra.mxu0 %v302
        %338 = vmatprep.subr.mxu0 0.0
        %339 = vmatpush1.xpose.msra.mxu0 %v303
        %340 = vmatprep.subr.mxu0 0.0
        %341 = vmatpush1.xpose.msra.mxu0 %v304
        %342 = vmatprep.subr.mxu0 0.0
        %343 = vmatpush1.xpose.msra.mxu0 %v305
        %344 = vmatprep.subr.mxu0 0.0
        %345 = vmatpush1.xpose.msra.mxu0 %v306
        %346 = vmatprep.subr.mxu0 0.0
        %347 = vmatpush1.xpose.msra.mxu0 %v307
        %348 = vmatprep.subr.mxu0 0.0
        %349 = vmatpush1.xpose.msra.mxu0 %v308
        %350 = vmatprep.subr.mxu0 0.0
        %351 = vmatpush1.xpose.msra.mxu0 %v309
        %352 = vmatprep.subr.mxu0 0.0
        %353 = vmatpush1.xpose.msra.mxu0 %v310
        %354 = vmatprep.subr.mxu0 0.0
        %355 = vmatpush1.xpose.msra.mxu0 %v311
        %356 = vmatprep.subr.mxu0 0.0
        %357 = vmatpush1.xpose.msra.mxu0 %v312
        %358 = vmatprep.subr.mxu0 0.0
        %359 = vmatpush1.xpose.msra.mxu0 %v313
        %360 = vmatprep.subr.mxu0 0.0
        %361 = vmatpush1.xpose.msra.mxu0 %v314
        %362 = vmatprep.subr.mxu0 0.0
        %363 = vmatpush1.xpose.msra.mxu0 %v315
        %364 = vmatprep.subr.mxu0 0.0
        %365 = vmatpush1.xpose.msra.mxu0 %v316
        %366 = vmatprep.subr.mxu0 0.0
        %367 = vmatpush1.xpose.msra.mxu0 %v317
        %368 = vmatprep.subr.mxu0 0.0
        %369 = vmatpush1.xpose.msra.mxu0 %v318
        %370 = vmatprep.subr.mxu0 0.0
        %371 = vmatpush1.xpose.msra.mxu0 %v319
        %372 = vmatprep.subr.mxu0 0.0
        %373 = vmatpush1.xpose.msra.mxu0 %v320
        %374 = vmatprep.subr.mxu0 0.0
        %375 = vmatpush1.xpose.msra.mxu0 %v321
        %376 = vmatprep.subr.mxu0 0.0
        %377 = vmatpush1.xpose.msra.mxu0 %v322
        %378 = vmatprep.subr.mxu0 0.0
        %379 = vmatpush1.xpose.msra.mxu0 %v323
        %380 = vmatprep.subr.mxu0 0.0
        %381 = vmatpush1.xpose.msra.mxu0 %v324
        %382 = vmatprep.subr.mxu0 0.0
        %383 = vmatpush1.xpose.msra.mxu0 %v325
        %384 = vmatprep.subr.mxu0 0.0
        %385 = vmatpush1.xpose.msra.mxu0 %v326
        %386 = vmatprep.subr.mxu0 0.0
        %387 = vmatpush1.xpose.msra.mxu0 %v327
        %388 = vmatprep.subr.mxu0 0.0
        %389 = vmatpush1.xpose.msra.mxu0 %v328
        %390 = vmatprep.subr.mxu0 0.0
        %391 = vmatpush1.xpose.msra.mxu0 %v329
        %392 = vmatprep.subr.mxu0 0.0
        %393 = vmatpush1.xpose.msra.mxu0 %v330
        %394 = vmatprep.subr.mxu0 0.0
        %395 = vmatpush1.xpose.msra.mxu0 %v331
        %396 = vmatprep.mubr.f32.mxu0 0.0
        %397 = vmatmul.mubr.f32.gmra.mrb[0].mxu0 %v284
        %v398 = vpop.f32.mrb[0].mxu0
        %v399 = vadd.f32 0.0, %v398
        %v400 = vpop.f32.mrb[0].mxu0
        %v401 = vadd.f32 0.0, %v400
        %402 = vmatprep.mubr.f32.mxu0 0.0
        %403 = vmatmul.mubr.f32.gmra.mrb[0].mxu0 %v285
        %v404 = vpop.f32.mrb[0].mxu0
        %v405 = vadd.f32 0.0, %v404
        %v406 = vpop.f32.mrb[0].mxu0
        %v407 = vadd.f32 0.0, %v406
        %408 = vmatprep.mubr.f32.mxu0 0.0
        %409 = vmatmul.mubr.f32.gmra.mrb[0].mxu0 %v286
        %v410 = vpop.f32.mrb[0].mxu0
        %v411 = vadd.f32 0.0, %v410
        %v412 = vpop.f32.mrb[0].mxu0
        %v413 = vadd.f32 0.0, %v412
        %414 = vmatprep.mubr.f32.mxu0 0.0
        %415 = vmatmul.mubr.f32.gmra.mrb[0].mxu0 %v287
        %v416 = vpop.f32.mrb[0].mxu0
        %v417 = vadd.f32 0.0, %v416
        %v418 = vpop.f32.mrb[0].mxu0
        %v419 = vadd.f32 0.0, %v418
        %420 = vmatprep.mubr.f32.mxu0 0.0
        %421 = vmatmul.mubr.f32.gmra.mrb[0].mxu0 %v288
        %v422 = vpop.f32.mrb[0].mxu0
        %v423 = vadd.f32 0.0, %v422
        %v424 = vpop.f32.mrb[0].mxu0
        %v425 = vadd.f32 0.0, %v424
        %426 = vmatprep.mubr.f32.mxu0 0.0
        %427 = vmatmul.mubr.f32.gmra.mrb[0].mxu0 %v289
        %v428 = vpop.f32.mrb[0].mxu0
        %v429 = vadd.f32 0.0, %v428
        %v430 = vpop.f32.mrb[0].mxu0
        %v431 = vadd.f32 0.0, %v430
        %432 = vmatprep.mubr.f32.mxu0 0.0
        %433 = vmatmul.mubr.f32.gmra.mrb[0].mxu0 %v290
        %v434 = vpop.f32.mrb[0].mxu0
        %v435 = vadd.f32 0.0, %v434
        %v436 = vpop.f32.mrb[0].mxu0
        %v437 = vadd.f32 0.0, %v436
        %438 = vmatprep.mubr.f32.mxu0 0.0
        %439 = vmatmul.mubr.f32.gmra.mrb[0].mxu0 %v291
        %v440 = vpop.f32.mrb[0].mxu0
        %v441 = vadd.f32 0.0, %v440
        %v442 = vpop.f32.mrb[0].mxu0
        %v443 = vadd.f32 0.0, %v442
        %444 = vmatprep.mubr.f32.mxu0 0.0
        %445 = vmatmul.mubr.f32.gmra.mrb[0].mxu0 %v292
        %v446 = vpop.f32.mrb[0].mxu0
        %v447 = vadd.f32 0.0, %v446
        %v448 = vpop.f32.mrb[0].mxu0
        %v449 = vadd.f32 0.0, %v448
        %450 = vmatprep.mubr.f32.mxu0 0.0
        %451 = vmatmul.mubr.f32.gmra.mrb[0].mxu0 %v293
        %v452 = vpop.f32.mrb[0].mxu0
        %v453 = vadd.f32 0.0, %v452
        %v454 = vpop.f32.mrb[0].mxu0
        %v455 = vadd.f32 0.0, %v454
        %456 = vmatprep.mubr.f32.mxu0 0.0
        %457 = vmatmul.mubr.f32.gmra.mrb[0].mxu0 %v294
        %v458 = vpop.f32.mrb[0].mxu0
        %v459 = vadd.f32 0.0, %v458
        %v460 = vpop.f32.mrb[0].mxu0
        %v461 = vadd.f32 0.0, %v460
        %462 = vmatprep.mubr.f32.mxu0 0.0
        %463 = vmatmul.mubr.f32.gmra.mrb[0].mxu0 %v295
        %v464 = vpop.f32.mrb[0].mxu0
        %v465 = vadd.f32 0.0, %v464
        %v466 = vpop.f32.mrb[0].mxu0
        %v467 = vadd.f32 0.0, %v466
        %468 = vmatprep.mubr.f32.mxu0 0.0
        %469 = vmatmul.mubr.f32.gmra.mrb[0].mxu0 %v296
        %v470 = vpop.f32.mrb[0].mxu0
        %v471 = vadd.f32 0.0, %v470
        %v472 = vpop.f32.mrb[0].mxu0
        %v473 = vadd.f32 0.0, %v472
        %474 = vmatprep.mubr.f32.mxu0 0.0
        %475 = vmatmul.mubr.f32.gmra.mrb[0].mxu0 %v297
        %v476 = vpop.f32.mrb[0].mxu0
        %v477 = vadd.f32 0.0, %v476
        %v478 = vpop.f32.mrb[0].mxu0
        %v479 = vadd.f32 0.0, %v478
        %480 = vmatprep.mubr.f32.mxu0 0.0
        %481 = vmatmul.mubr.f32.gmra.mrb[0].mxu0 %v298
        %v482 = vpop.f32.mrb[0].mxu0
        %v483 = vadd.f32 0.0, %v482
        %v484 = vpop.f32.mrb[0].mxu0
        %v485 = vadd.f32 0.0, %v484
        %486 = vmatprep.mubr.f32.mxu0 0.0
        %487 = vmatmul.mubr.f32.gmra.mrb[0].mxu0 %v299
        %v488 = vpop.f32.mrb[0].mxu0
        %v489 = vadd.f32 0.0, %v488
        %v490 = vpop.f32.mrb[0].mxu0
        %v491 = vadd.f32 0.0, %v490
        %492 = vdwg.mxu0
        %v493 = vadd.f32 %v252, %v399
        %v494 = vadd.f32 %v253, %v401
        %v495 = vadd.f32 %v254, %v405
        %v496 = vadd.f32 %v255, %v407
        %v497 = vadd.f32 %v256, %v411
        %v498 = vadd.f32 %v257, %v413
        %v499 = vadd.f32 %v258, %v417
        %v500 = vadd.f32 %v259, %v419
        %v501 = vadd.f32 %v260, %v423
        %v502 = vadd.f32 %v261, %v425
        %v503 = vadd.f32 %v262, %v429
        %v504 = vadd.f32 %v263, %v431
        %v505 = vadd.f32 %v264, %v435
        %v506 = vadd.f32 %v265, %v437
        %v507 = vadd.f32 %v266, %v441
        %v508 = vadd.f32 %v267, %v443
        %v509 = vadd.f32 %v268, %v447
        %v510 = vadd.f32 %v269, %v449
        %v511 = vadd.f32 %v270, %v453
        %v512 = vadd.f32 %v271, %v455
        %v513 = vadd.f32 %v272, %v459
        %v514 = vadd.f32 %v273, %v461
        %v515 = vadd.f32 %v274, %v465
        %v516 = vadd.f32 %v275, %v467
        %v517 = vadd.f32 %v276, %v471
        %v518 = vadd.f32 %v277, %v473
        %v519 = vadd.f32 %v278, %v477
        %v520 = vadd.f32 %v279, %v479
        %v521 = vadd.f32 %v280, %v483
        %v522 = vadd.f32 %v281, %v485
        %v523 = vadd.f32 %v282, %v489
        %v524 = vadd.f32 %v283, %v491
        %525 = vst [vmem:[%s211] sm:$0xff] %v493
        %526 = vst [vmem:[%s211 + $0x8] sm:$0xff] %v494
        %527 = vst [vmem:[%s211 + $0x10] sm:$0xff] %v495
        %528 = vst [vmem:[%s211 + $0x18] sm:$0xff] %v496
        %529 = vst [vmem:[%s211 + $0x20] sm:$0xff] %v497
        %530 = vst [vmem:[%s211 + $0x28] sm:$0xff] %v498
        %531 = vst [vmem:[%s211 + $0x30] sm:$0xff] %v499
        %532 = vst [vmem:[%s211 + $0x38] sm:$0xff] %v500
        %533 = vst [vmem:[%s211 + $0x40] sm:$0xff] %v501
        %534 = vst [vmem:[%s211 + $0x48] sm:$0xff] %v502
        %535 = vst [vmem:[%s211 + $0x50] sm:$0xff] %v503
        %536 = vst [vmem:[%s211 + $0x58] sm:$0xff] %v504
        %537 = vst [vmem:[%s211 + $0x60] sm:$0xff] %v505
        %538 = vst [vmem:[%s211 + $0x68] sm:$0xff] %v506
        %539 = vst [vmem:[%s211 + $0x70] sm:$0xff] %v507
        %540 = vst [vmem:[%s211 + $0x78] sm:$0xff] %v508
        %541 = vst [vmem:[%s211 + $0x80] sm:$0xff] %v509
        %542 = vst [vmem:[%s211 + $0x88] sm:$0xff] %v510
        %543 = vst [vmem:[%s211 + $0x90] sm:$0xff] %v511
        %544 = vst [vmem:[%s211 + $0x98] sm:$0xff] %v512
        %545 = vst [vmem:[%s211 + $0xa0] sm:$0xff] %v513
        %546 = vst [vmem:[%s211 + $0xa8] sm:$0xff] %v514
        %547 = vst [vmem:[%s211 + $0xb0] sm:$0xff] %v515
        %548 = vst [vmem:[%s211 + $0xb8] sm:$0xff] %v516
        %549 = vst [vmem:[%s211 + $0xc0] sm:$0xff] %v517
        %550 = vst [vmem:[%s211 + $0xc8] sm:$0xff] %v518
        %551 = vst [vmem:[%s211 + $0xd0] sm:$0xff] %v519
        %552 = vst [vmem:[%s211 + $0xd8] sm:$0xff] %v520
        %553 = vst [vmem:[%s211 + $0xe0] sm:$0xff] %v521
        %554 = vst [vmem:[%s211 + $0xe8] sm:$0xff] %v522
        %555 = vst [vmem:[%s211 + $0xf0] sm:$0xff] %v523
        %556 = vst [vmem:[%s211 + $0xf8] sm:$0xff] %v524
        %s557 = sand.u32 %s105, 1
        %s558 = scalar_lea.sflag [#allocation4], %s557
        %s559 = sand.u32 %s105, 1
        %s560 = smul.addr %s559, 256
        %s561 = scalar_lea.vmem [#allocation7], %s560
        // Predicated region
        $region41: #{matmul_bt.1} parent=27 // pred_check
          %p562 = pneg %p115
        $region42: #{matmul_bt.1} parent=27 // pred_check_branch
          %564 = sbr.rel (%p562) target = $region44
        $region43: #{matmul_bt.1} parent=27 // pred_region
          %s565 = smul.u32 16, %s25
          %s566 = smul.u32 2, %s26
          %s568 = ssub.s32 4096, 4096
          %569 = vsyncadd %s558, %s568
          %s570 = smul.addr %s565, 2
          %s571 = sadd.s32 %s566, %s570
          %s572 = smul.addr %s571, 128
          %s573 = scalar_lea.hbm %s2, %s572
          %s574 = sshll.u32 %s561, 4
          %s575 = int_to_ptr.vmem [resolvable:$true] %s574
          %580 = dma.vmem_to_hbm [thread:$0]  %s575, 4096, %s573, %s558, 256, 256, 16
        $region44: #{matmul_bt.1} parent=27 // pred_fallthru
          _
      $region28: #{matmul_bt.1} parent=5 // pred_fallthru
        _
      %p581 = scmp.le.s32.totalorder 2, %s15
      // Predicated region
      $region45: #{matmul_bt.1} parent=5 // pred_check
        %p582 = pneg %p581
      $region46: #{matmul_bt.1} parent=5 // pred_check_branch
        %584 = sbr.rel (%p582) target = $region48
      $region47: #{matmul_bt.1} parent=5 // pred_region
        %s585 = ssub.s32 %s15, 2
        // Predicated region
        $region49: #{matmul_bt.1} parent=47 // pred_check
          %p586 = pneg %p121
        $region50: #{matmul_bt.1} parent=47 // pred_check_branch
          %588 = sbr.rel (%p586) target = $region52
        $region51: #{matmul_bt.1} parent=47 // pred_region
          %s589 = sand.u32 %s106, 1
          %s590 = scalar_lea.sflag [#allocation4], %s589
          %s591 = sand.u32 %s106, 1
          %s592 = smul.addr %s591, 256
          %s593 = scalar_lea.vmem [#allocation7], %s592
          %594 = dma.done %s590, 4096
        $region52: #{matmul_bt.1} parent=47 // pred_fallthru
          _
      $region48: #{matmul_bt.1} parent=5 // pred_fallthru
        _
    $region6: #{matmul_bt.1} parent=1 // loop_footer
      %s19 = sadd.s32 1, %s15
    $region7: #{matmul_bt.1} parent=1 // loop_footer_branch
      %14 = sbr.rel target = $region3
    $region8: #{matmul_bt.1} parent=1 // loop_exit
      _
    %595 = vsyncpa [#allocation3], 1
    %s596 = scalar_lea.sflag [#allocation3], 1
    %597 = vsyncpa %s596, 1
    %598 = vsyncpa [#allocation6], 1
    %599 = vsyncpa [#allocation4], 1
    %s600 = scalar_lea.sflag [#allocation4], 1
    %601 = vsyncpa %s600, 1

</llo_original>
